<compile_context>
chip_gen: v7x
topology: tpu7x:2x2x1
jax: 0.10.0
libtpu: 0.0.40
codegen_flags: <defaults>
</compile_context>

<pallas_src>
import math

import jax
import jax.numpy as jnp
from jax.experimental import pallas as pl
from jax.experimental.pallas import tpu as pltpu


def _lambda_copy_kernel(x_hbm, o_hbm):
    # The Lambda's func (flatten/view) has no arithmetic: the only work is the
    # materialization of func(x), realized as one HBM->HBM DMA.
    def body(sem):
        cp = pltpu.make_async_copy(x_hbm, o_hbm, sem)
        cp.start()
        cp.wait()

    pl.run_scoped(body, pltpu.SemaphoreType.DMA)


def pallas_flatten(x, *, materialize=False):
    """JAX/Pallas equivalent of torch `x.view(x.size(0), -1)`.

    materialize=False (default): metadata-only reshape — zero HBM traffic.
    materialize=True: distinct output buffer produced by a gridless Pallas
    kernel that performs a single direct HBM->HBM DMA (pl.ANY memory spaces).
    """
    n = x.shape[0] if x.ndim > 0 else 1
    d = int(math.prod(x.shape[1:])) if x.ndim > 1 else 1
    out_shape = (n, d)

    if not materialize:
        # Zero-cost path: pure metadata, no HBM round trip at all.
        return x.reshape(out_shape)

    itemsize = jnp.dtype(x.dtype).itemsize
    x_flat = x.reshape(out_shape)  # metadata-only glue reshape (row-major)

    return pl.pallas_call(
        _lambda_copy_kernel,
        out_shape=jax.ShapeDtypeStruct(out_shape, x.dtype),
        in_specs=[pl.BlockSpec(memory_space=pl.ANY)],
        out_specs=pl.BlockSpec(memory_space=pl.ANY),
        # Pure mem-bound identity copy: read + write of the whole array.
        cost_estimate=pl.CostEstimate(
            flops=0,
            transcendentals=0,
            bytes_accessed=2 * n * d * itemsize,
        ),
    )(x_flat)


class Lambda:
    """JAX mirror of the PyTorch Lambda module: forward(x) = func(x)."""

    def __init__(self, func):
        self.func = func

    def __call__(self, x):
        return self.func(x)


if __name__ == "__main__":
    key = jax.random.PRNGKey(0)
    # Small NCHW input consistent with how Lambda is used in the tutorial
    # (flatten after conv/pool stages).
    x = jax.random.normal(key, (2, 4, 16, 16), dtype=jnp.float32)
    ref = x.reshape(x.shape[0], -1)

    # Lambda(lambda x: x.view(x.size(0), -1)) — default is the zero-cost view.
    model = Lambda(pallas_flatten)
    y_view = jax.block_until_ready(model(x))
    assert y_view.shape == ref.shape and y_view.dtype == ref.dtype
    assert bool(jnp.array_equal(y_view, ref))

    # Explicitly materialized path: single HBM->HBM DMA Pallas kernel.
    y_mat = jax.block_until_ready(pallas_flatten(x, materialize=True))
    assert y_mat.shape == ref.shape and y_mat.dtype == ref.dtype
    assert bool(jnp.array_equal(y_mat, ref))

    # Packed dtype (bf16) goes through the same shape/dtype-agnostic DMA path.
    xb = x.astype(jnp.bfloat16)
    yb = jax.block_until_ready(pallas_flatten(xb, materialize=True))
    refb = xb.reshape(xb.shape[0], -1)
    assert yb.shape == refb.shape and yb.dtype == refb.dtype
    assert bool(jnp.array_equal(yb, refb))

    print("KERNEL_OK")
</pallas_src>

<mosaic_0001>
module attributes {stable_mosaic.version = 11 : i64} {
  func.func @_lambda_copy_kernel(%arg0: memref<2x1024xf32, #tpu.memory_space<any>>, %arg1: memref<2x1024xf32, #tpu.memory_space<any>>) attributes {dimension_semantics = [], scalar_prefetch = 0 : i64, scratch_operands = 0 : i64, tpu.core_type = #tpu.core_type<tc>} {
    "tpu.region"() ({
      %0 = tpu.sem_alloc : memref<!tpu.dma_semaphore, #tpu.memory_space<semaphore_mem>>
      tpu.enqueue_dma source(%arg0 : memref<2x1024xf32, #tpu.memory_space<any>>) target(%arg1 : memref<2x1024xf32, #tpu.memory_space<any>>) target_semaphore(%0 : memref<!tpu.dma_semaphore, #tpu.memory_space<semaphore_mem>>)
      tpu.wait_dma2 semaphore(%0 : memref<!tpu.dma_semaphore, #tpu.memory_space<semaphore_mem>>) src(%arg0 : memref<2x1024xf32, #tpu.memory_space<any>>) dst(%arg1 : memref<2x1024xf32, #tpu.memory_space<any>>)
      tpu.yield
    }) : () -> ()
    return
  }
}

</mosaic_0001>

<llo_original>
// kernel: tpu_custom_call.1
$region0: #{tpu_custom_call.1}
  #allocation0 [shape = 'u32[]', space=smem, size = 0x4, offset = 0x4, fixed_abs, tag = 'smem constant byte address 0x4 - core index']
  #allocation1 [shape = 'u32[144,128]{1,0:T(1,128)}', space=vmem, size = 0x12000, scoped, tag = 'internal scratch']
  #allocation3 [shape = 's32[]', space=sflag, size = 0x4, offset = 0, fixed_abs, tag = 'sflag constant byte address 0x0 - dummy sync flag']
  #allocation4 [shape = 'u32[0]{0}', space=smem, size = 0, offset = 0, fixed_abs, tag = 'smem constant byte address 0x0 - null']
  %s0 = inlined_call_operand.hbm [shape: f32[2,1024], index: 0, kind: input, shape index: {}]
  %s1 = inlined_call_operand.hbm [shape: f32[2,1024], index: 1, kind: output, shape index: {}]
  %s2 = sld [smem:[#allocation0]]
  $region3: #{tpu_custom_call.1} parent=0
    _
  %s4 = ssub.s32 1, %s2
  %s5 = scalar_select 0, %s4, %s2
  $region2: #{tpu_custom_call.1} parent=0
    #allocation2 [shape = 's32[1]{0}', space=sflag, size = 0x4, scoped, tag = 'scoped memory for tpu_custom_call.1']
    %s7 = sshll.u32 1, 14
    %s8 = sxor.u32 4294967295, %s7
    %s11 = sshll.u32 3, 24
    %s12 = sxor.u32 4294967295, %s11
    %s13 = sand.u32 0, %s12
    %s15 = sor.u32 %s13, 0
    %18 = dma.general %s0, 256, %s1, [#allocation2], [#allocation3], [#allocation4], %s15, 0
    %s19 = smul.u32 2, 1
    %s20 = smul.u32 %s19, 8
    %s21 = sshll.u32 %s20, 4
    %22 = dma.done [#allocation2], %s21

</llo_original>
